<compile_context>
chip_gen: v5e
topology: v5e:2x2
jax: 0.10.0
libtpu: 0.0.40
codegen_flags: <defaults>
</compile_context>

<pallas_src>
import functools

import jax
import jax.numpy as jnp
from jax.experimental import pallas as pl
from jax.experimental.pallas import tpu as pltpu


def _round_up(n, m):
    return (n + m - 1) // m * m


def _mlp_kernel(layer_meta, use_bf16, x_ref, w_ref, b_ref, out_ref):
    """Fused MLP forward on one (TM, feat) activation tile.

    layer_meta: tuple of (layer_idx, row_off, in_pad, out_pad, apply_relu),
    all static Python ints/bools.  Weight slab rows [row_off, row_off+in_pad)
    and columns [0, out_pad) hold layer i's (in, out) weight (zero padded).
    """
    x = x_ref[...].astype(jnp.float32)
    for (li, row_off, in_pad, out_pad, apply_relu) in layer_meta:
        w = w_ref[row_off:row_off + in_pad, 0:out_pad]          # (in_pad, out_pad)
        b = b_ref[li:li + 1, 0:out_pad].astype(jnp.float32)     # (1, out_pad)
        if use_bf16:
            y = jnp.dot(x.astype(jnp.bfloat16), w.astype(jnp.bfloat16),
                        preferred_element_type=jnp.float32)
        else:
            y = jnp.dot(x, w.astype(jnp.float32),
                        preferred_element_type=jnp.float32)
        x = y + b
        if apply_relu:
            x = jnp.maximum(x, 0.0)
    out_ref[...] = x.astype(out_ref.dtype)


def init_dqn_params(key, num_state, num_action, layers, dtype=jnp.float32):
    """Deterministic PyTorch-style init: weight (out, in), bias (out,)."""
    dims = [num_state] + list(layers) + [num_action]
    params = []
    for i in range(len(dims) - 1):
        fan_in, fan_out = dims[i], dims[i + 1]
        key, kw, kb = jax.random.split(key, 3)
        bound = 1.0 / jnp.sqrt(fan_in)
        w = jax.random.uniform(kw, (fan_out, fan_in), dtype, -bound, bound)
        b = jax.random.uniform(kb, (fan_out,), dtype, -bound, bound)
        params.append((w, b))
    return params


def dqn_forward(x, params, layers, *, tm=256, use_bf16=False):
    """x: (batch, num_state) -> (batch, num_action)."""
    batch, num_state = x.shape
    num_action = params[-1][0].shape[0]
    dims = [num_state] + list(layers) + [num_action]
    n_layers = len(params)
    assert n_layers == len(dims) - 1

    # --- pack all parameters into one weight slab and one bias slab -------
    in_pads = [_round_up(dims[i], 128) for i in range(n_layers)]
    out_pads = [_round_up(dims[i + 1], 128) for i in range(n_layers)]
    max_out = max(out_pads)
    row_offs, r = [], 0
    for p in in_pads:
        row_offs.append(r)
        r += p
    total_rows = r

    w_slab = jnp.zeros((total_rows, max_out), jnp.float32)
    b_slab = jnp.zeros((n_layers, max_out), jnp.float32)
    for i, (w, b) in enumerate(params):
        w_slab = w_slab.at[row_offs[i]:row_offs[i] + dims[i],
                           :dims[i + 1]].set(jnp.transpose(w).astype(jnp.float32))
        b_slab = b_slab.at[i, :dims[i + 1]].set(b.astype(jnp.float32))

    # --- batch tiling ------------------------------------------------------
    tm = min(tm, _round_up(batch, 8))          # small batches: single tile
    batch_pad = _round_up(batch, tm)
    nb = batch_pad // tm

    feat0 = in_pads[0]
    out_pad = out_pads[-1]

    x_p = jnp.zeros((batch_pad, feat0), jnp.float32)
    x_p = x_p.at[:batch, :num_state].set(x.astype(jnp.float32))

    layer_meta = tuple(
        (i, row_offs[i], in_pads[i], out_pads[i], i < len(layers))
        for i in range(n_layers)
    )
    kernel = functools.partial(_mlp_kernel, layer_meta, use_bf16)

    out_padded = pl.pallas_call(
        kernel,
        out_shape=jax.ShapeDtypeStruct((batch_pad, out_pad), x.dtype),
        grid_spec=pltpu.PrefetchScalarGridSpec(
            num_scalar_prefetch=0,
            grid=(nb,),
            in_specs=[
                pl.BlockSpec((tm, feat0), lambda i: (i, 0)),       # activations
                pl.BlockSpec(w_slab.shape, lambda i: (0, 0)),      # resident weights
                pl.BlockSpec(b_slab.shape, lambda i: (0, 0)),      # resident biases
            ],
            out_specs=pl.BlockSpec((tm, out_pad), lambda i: (i, 0)),
        ),
        compiler_params=pltpu.CompilerParams(
            dimension_semantics=("parallel",),       # megacore on v7x
            vmem_limit_bytes=32 * 1024 * 1024,       # safe on v5e/v6e/v7x
        ),
    )(x_p, w_slab, b_slab)

    return out_padded[:batch, :num_action]


def dqn_forward_ref(x, params, layers):
    """Pure-JAX reference matching the PyTorch forward."""
    h = x
    for i, (w, b) in enumerate(params):
        h = h @ w.T + b
        if i < len(layers):
            h = jnp.maximum(h, 0.0)
    return h


if __name__ == "__main__":
    # Small shapes consistent with the module: an MLP Q-network.
    num_state = 32
    num_action = 8
    layers = [64, 32]

    key = jax.random.PRNGKey(0)
    params = init_dqn_params(key, num_state, num_action, layers)

    # --- small batch (single tile, grid=(1,)) ---
    key, kx = jax.random.split(key)
    x_small = jax.random.normal(kx, (8, num_state), dtype=jnp.float32)
    out_small = jax.block_until_ready(dqn_forward(x_small, params, layers))
    ref_small = dqn_forward_ref(x_small, params, layers)
    assert out_small.shape == (8, num_action)
    assert jnp.allclose(out_small, ref_small, atol=1e-5, rtol=1e-5), \
        "small-batch mismatch vs reference"

    # --- larger batch exercising the batch grid axis + padding (grid=(2,)) ---
    key, kx2 = jax.random.split(key)
    x_big = jax.random.normal(kx2, (300, num_state), dtype=jnp.float32)
    out_big = jax.block_until_ready(dqn_forward(x_big, params, layers))
    ref_big = dqn_forward_ref(x_big, params, layers)
    assert out_big.shape == (300, num_action)
    assert jnp.allclose(out_big, ref_big, atol=1e-5, rtol=1e-5), \
        "batched-grid mismatch vs reference"

    print("KERNEL_OK")
</pallas_src>

<mosaic_0001>
module attributes {stable_mosaic.version = 11 : i64} {
  func.func @_mlp_kernel(%arg0: i32, %arg1: memref<8x128xf32, #tpu.memory_space<vmem>>, %arg2: memref<384x128xf32, #tpu.memory_space<vmem>>, %arg3: memref<3x128xf32, #tpu.memory_space<vmem>>, %arg4: memref<8x128xf32, #tpu.memory_space<vmem>>) attributes {dimension_semantics = [#tpu.dimension_semantics<parallel>], iteration_bounds = array<i64: 1>, scalar_prefetch = 0 : i64, scratch_operands = 0 : i64, tpu.core_type = #tpu.core_type<tc>, window_params = [{transform_indices = @transform_0, window_bounds = array<i64: 8, 128>}, {pipeline_mode = #tpu.pipeline_mode<synchronous>, transform_indices = @transform_1, window_bounds = array<i64: 384, 128>}, {pipeline_mode = #tpu.pipeline_mode<synchronous>, transform_indices = @transform_2, window_bounds = array<i64: 3, 128>}, {transform_indices = @transform_3, window_bounds = array<i64: 8, 128>}]} {
    %c0 = arith.constant 0 : index
    %c0_0 = arith.constant 0 : index
    %0 = vector.load %arg1[%c0, %c0_0] : memref<8x128xf32, #tpu.memory_space<vmem>>, vector<8x128xf32>
    %c0_1 = arith.constant 0 : index
    %c0_2 = arith.constant 0 : index
    %1 = vector.load %arg2[%c0_1, %c0_2] : memref<384x128xf32, #tpu.memory_space<vmem>>, vector<128x128xf32>
    %c0_3 = arith.constant 0 : index
    %c0_4 = arith.constant 0 : index
    %2 = vector.load %arg3[%c0_3, %c0_4] : memref<3x128xf32, #tpu.memory_space<vmem>>, vector<1x128xf32>
    %cst = arith.constant dense<0.000000e+00> : vector<8x128xf32>
    %3 = tpu.matmul %0, %1, %cst {dimension_numbers = #tpu.dot_dimension_numbers<[1], [0], [0], [1], [0, 0, 1, 1], [], []>} : vector<8x128xf32>, vector<128x128xf32>, vector<8x128xf32> -> vector<8x128xf32>
    %4 = vector.broadcast %2 : vector<1x128xf32> to vector<8x128xf32>
    %5 = arith.addf %3, %4 : vector<8x128xf32>
    %cst_5 = arith.constant 0.000000e+00 : f32
    %6 = vector.broadcast %cst_5 : f32 to vector<8x128xf32>
    %7 = arith.maximumf %5, %6 : vector<8x128xf32>
    %c128 = arith.constant 128 : index
    %c0_6 = arith.constant 0 : index
    %8 = vector.load %arg2[%c128, %c0_6] : memref<384x128xf32, #tpu.memory_space<vmem>>, vector<128x128xf32>
    %c1 = arith.constant 1 : index
    %c0_7 = arith.constant 0 : index
    %9 = vector.load %arg3[%c1, %c0_7] : memref<3x128xf32, #tpu.memory_space<vmem>>, vector<1x128xf32>
    %cst_8 = arith.constant dense<0.000000e+00> : vector<8x128xf32>
    %10 = tpu.matmul %7, %8, %cst_8 {dimension_numbers = #tpu.dot_dimension_numbers<[1], [0], [0], [1], [0, 0, 1, 1], [], []>} : vector<8x128xf32>, vector<128x128xf32>, vector<8x128xf32> -> vector<8x128xf32>
    %11 = vector.broadcast %9 : vector<1x128xf32> to vector<8x128xf32>
    %12 = arith.addf %10, %11 : vector<8x128xf32>
    %cst_9 = arith.constant 0.000000e+00 : f32
    %13 = vector.broadcast %cst_9 : f32 to vector<8x128xf32>
    %14 = arith.maximumf %12, %13 : vector<8x128xf32>
    %c256 = arith.constant 256 : index
    %c0_10 = arith.constant 0 : index
    %15 = vector.load %arg2[%c256, %c0_10] : memref<384x128xf32, #tpu.memory_space<vmem>>, vector<128x128xf32>
    %c2 = arith.constant 2 : index
    %c0_11 = arith.constant 0 : index
    %16 = vector.load %arg3[%c2, %c0_11] : memref<3x128xf32, #tpu.memory_space<vmem>>, vector<1x128xf32>
    %cst_12 = arith.constant dense<0.000000e+00> : vector<8x128xf32>
    %17 = tpu.matmul %14, %15, %cst_12 {dimension_numbers = #tpu.dot_dimension_numbers<[1], [0], [0], [1], [0, 0, 1, 1], [], []>} : vector<8x128xf32>, vector<128x128xf32>, vector<8x128xf32> -> vector<8x128xf32>
    %18 = vector.broadcast %16 : vector<1x128xf32> to vector<8x128xf32>
    %19 = arith.addf %17, %18 : vector<8x128xf32>
    %c0_13 = arith.constant 0 : index
    %c0_14 = arith.constant 0 : index
    %20 = vector.load %arg4[%c0_13, %c0_14] : memref<8x128xf32, #tpu.memory_space<vmem>>, vector<8x128xf32>
    tpu.vector_store %arg4[%c0_13, %c0_14], %19 {strides = array<i32>} : memref<8x128xf32, #tpu.memory_space<vmem>>, vector<8x128xf32>,
    return
  }
  func.func @transform_0(%arg0: i32) -> (i32, i32) {
    %c0_i32 = arith.constant 0 : i32
    %c0_i32_0 = arith.constant 0 : i32
    return %arg0, %c0_i32 : i32, i32
  }
  func.func @transform_1(%arg0: i32) -> (i32, i32) {
    %c0_i32 = arith.constant 0 : i32
    %c0_i32_0 = arith.constant 0 : i32
    %c0_i32_1 = arith.constant 0 : i32
    return %c0_i32, %c0_i32_0 : i32, i32
  }
  func.func @transform_2(%arg0: i32) -> (i32, i32) {
    %c0_i32 = arith.constant 0 : i32
    %c0_i32_0 = arith.constant 0 : i32
    %c0_i32_1 = arith.constant 0 : i32
    return %c0_i32, %c0_i32_0 : i32, i32
  }
  func.func @transform_3(%arg0: i32) -> (i32, i32) {
    %c0_i32 = arith.constant 0 : i32
    %c0_i32_0 = arith.constant 0 : i32
    return %arg0, %c0_i32 : i32, i32
  }
}

</mosaic_0001>

<llo_original>
// kernel: tpu_custom_call.1
$region0: #{tpu_custom_call.1}
  #allocation0 [shape = 'u32[]', space=smem, size = 0x4, offset = 0x4, fixed_abs, tag = 'smem constant byte address 0x4 - core index']
  #allocation1 [shape = 'u32[72,128]{1,0:T(1,128)}', space=vmem, size = 0x9000, scoped, tag = 'internal scratch']
  %s0 = inlined_call_operand.hbm [shape: f32[8,128], index: 0, kind: input, shape index: {}]
  %s1 = inlined_call_operand.hbm [shape: f32[384,128], index: 1, kind: input, shape index: {}]
  %s2 = inlined_call_operand.hbm [shape: f32[3,128], index: 2, kind: input, shape index: {}]
  %s3 = inlined_call_operand.hbm [shape: f32[8,128], index: 3, kind: output, shape index: {}]
  %s4 = sld [smem:[#allocation0]]
  $region34: #{tpu_custom_call.1} parent=0
    _
  %s6 = ssub.s32 1, %s4
  %s7 = scalar_select 0, %s6, %s4
  $region1: #{tpu_custom_call.1} parent=0
    #allocation2 [shape = 'u8[4096]{0}', space=vmem, size = 0x1000, scoped, tag = 'input window, operand 0, single buffered']
    #allocation3 [shape = 's32[1]{0}', space=sflag, size = 0x4, scoped, tag = 'scoped memory for tpu_custom_call.1']
    #allocation4 [shape = 's32[1]{0}', space=sflag, size = 0x4, scoped, tag = 'scoped memory for tpu_custom_call.1']
    #allocation5 [shape = 'u8[196608]{0}', space=vmem, size = 0x30000, scoped, tag = 'input window, operand 1, single buffered']
    #allocation6 [shape = 's32[1]{0}', space=sflag, size = 0x4, scoped, tag = 'scoped memory for tpu_custom_call.1']
    #allocation7 [shape = 'u8[2048]{0}', space=vmem, size = 0x800, scoped, tag = 'input window, operand 2, single buffered']
    #allocation8 [shape = 'u8[4096]{0}', space=vmem, size = 0x1000, scoped, tag = 'output window, operand 0, single buffered']
    %8 = vsyncpa [#allocation3], 0
    %9 = vsyncpa [#allocation6], 0
    %10 = vsyncpa [#allocation4], 0
    // Predicated region
    $region2: #{tpu_custom_call.1} parent=1 // pred_check
      _
    $region3: #{tpu_custom_call.1} parent=1 // pred_check_branch
      %12 = sbr.rel (0) target = $region5
    $region4: #{tpu_custom_call.1} parent=1 // pred_region
      %14 = vsyncadd [#allocation3], 0
      %s16 = sshll.u32 %s0, 4
      %s17 = int_to_ptr.hbm [resolvable:$true] %s16
      %s18 = sshll.u32 [#allocation2], 4
      %s19 = int_to_ptr.vmem [resolvable:$true] %s18
      %21 = dma.hbm_to_vmem [thread:$0]  %s17, 128, %s19, [#allocation3]
    $region5: #{tpu_custom_call.1} parent=1 // pred_fallthru
      _
    // Predicated region
    $region6: #{tpu_custom_call.1} parent=1 // pred_check
      _
    $region7: #{tpu_custom_call.1} parent=1 // pred_check_branch
      %23 = sbr.rel (0) target = $region9
    $region8: #{tpu_custom_call.1} parent=1 // pred_region
      %25 = vsyncadd [#allocation6], 0
      %s26 = sshll.u32 %s1, 4
      %s27 = int_to_ptr.hbm [resolvable:$true] %s26
      %s28 = sshll.u32 [#allocation5], 4
      %s29 = int_to_ptr.vmem [resolvable:$true] %s28
      %34 = dma.hbm_to_vmem [thread:$0]  %s27, 6144, %s29, [#allocation6], 128, 128, 8
    $region9: #{tpu_custom_call.1} parent=1 // pred_fallthru
      _
    // Predicated region
    $region10: #{tpu_custom_call.1} parent=1 // pred_check
      _
    $region11: #{tpu_custom_call.1} parent=1 // pred_check_branch
      %36 = sbr.rel (0) target = $region13
    $region12: #{tpu_custom_call.1} parent=1 // pred_region
      %38 = vsyncadd [#allocation6], 0
      %s40 = sshll.u32 %s2, 4
      %s41 = int_to_ptr.hbm [resolvable:$true] %s40
      %s42 = sshll.u32 [#allocation7], 4
      %s43 = int_to_ptr.vmem [resolvable:$true] %s42
      %45 = dma.hbm_to_vmem [thread:$0]  %s41, 64, %s43, [#allocation6]
    $region13: #{tpu_custom_call.1} parent=1 // pred_fallthru
      _
    // Predicated region
    $region14: #{tpu_custom_call.1} parent=1 // pred_check
      _
    $region15: #{tpu_custom_call.1} parent=1 // pred_check_branch
      %47 = sbr.rel (0) target = $region17
    $region16: #{tpu_custom_call.1} parent=1 // pred_region
      %49 = dma.done [#allocation3], 128
    $region17: #{tpu_custom_call.1} parent=1 // pred_fallthru
      _
    // Predicated region
    $region18: #{tpu_custom_call.1} parent=1 // pred_check
      _
    $region19: #{tpu_custom_call.1} parent=1 // pred_check_branch
      %51 = sbr.rel (0) target = $region21
    $region20: #{tpu_custom_call.1} parent=1 // pred_region
      %53 = dma.done [#allocation6], 6144
    $region21: #{tpu_custom_call.1} parent=1 // pred_fallthru
      _
    // Predicated region
    $region22: #{tpu_custom_call.1} parent=1 // pred_check
      _
    $region23: #{tpu_custom_call.1} parent=1 // pred_check_branch
      %55 = sbr.rel (0) target = $region25
    $region24: #{tpu_custom_call.1} parent=1 // pred_region
      %57 = dma.done [#allocation6], 64
    $region25: #{tpu_custom_call.1} parent=1 // pred_fallthru
      _
    %v58 = vld [vmem:[#allocation2] sm:$0xff]
    %v59 = vld [vmem:[#allocation5] sm:$0xff]
    %v60 = vld [vmem:[#allocation5 + $0x8] sm:$0xff]
    %v61 = vld [vmem:[#allocation5 + $0x10] sm:$0xff]
    %v62 = vld [vmem:[#allocation5 + $0x18] sm:$0xff]
    %v63 = vld [vmem:[#allocation5 + $0x20] sm:$0xff]
    %v64 = vld [vmem:[#allocation5 + $0x28] sm:$0xff]
    %v65 = vld [vmem:[#allocation5 + $0x30] sm:$0xff]
    %v66 = vld [vmem:[#allocation5 + $0x38] sm:$0xff]
    %v67 = vld [vmem:[#allocation5 + $0x40] sm:$0xff]
    %v68 = vld [vmem:[#allocation5 + $0x48] sm:$0xff]
    %v69 = vld [vmem:[#allocation5 + $0x50] sm:$0xff]
    %v70 = vld [vmem:[#allocation5 + $0x58] sm:$0xff]
    %v71 = vld [vmem:[#allocation5 + $0x60] sm:$0xff]
    %v72 = vld [vmem:[#allocation5 + $0x68] sm:$0xff]
    %v73 = vld [vmem:[#allocation5 + $0x70] sm:$0xff]
    %v74 = vld [vmem:[#allocation5 + $0x78] sm:$0xff]
    %v75 = vld [vmem:[#allocation7] sm:$0x1]
    %v76 = vperm.slane %v75, 0
    %77 = vmatpush.msra.mxu0 %v74
    %78 = vmatpush.msra.mxu0 %v73
    %79 = vmatpush.msra.mxu0 %v72
    %80 = vmatpush.msra.mxu0 %v71
    %81 = vmatpush.msra.mxu0 %v70
    %82 = vmatpush.msra.mxu0 %v69
    %83 = vmatpush.msra.mxu0 %v68
    %84 = vmatpush.msra.mxu0 %v67
    %85 = vmatpush.msra.mxu0 %v66
    %86 = vmatpush.msra.mxu0 %v65
    %87 = vmatpush.msra.mxu0 %v64
    %88 = vmatpush.msra.mxu0 %v63
    %89 = vmatpush.msra.mxu0 %v62
    %90 = vmatpush.msra.mxu0 %v61
    %91 = vmatpush.msra.mxu0 %v60
    %92 = vmatpush.msra.mxu0 %v59
    %93 = vmatmul.f32.gmra.mxu0 %v58
    %v94 = vpop.f32.mrf.mxu0
    %v95 = vadd.f32 %v76, %v94
    %96 = vdwg.mxu0
    %v97 = vmax.f32 %v95, 0.0
    %v98 = vld [vmem:[#allocation5 + $0x80] sm:$0xff]
    %v99 = vld [vmem:[#allocation5 + $0x88] sm:$0xff]
    %v100 = vld [vmem:[#allocation5 + $0x90] sm:$0xff]
    %v101 = vld [vmem:[#allocation5 + $0x98] sm:$0xff]
    %v102 = vld [vmem:[#allocation5 + $0xa0] sm:$0xff]
    %v103 = vld [vmem:[#allocation5 + $0xa8] sm:$0xff]
    %v104 = vld [vmem:[#allocation5 + $0xb0] sm:$0xff]
    %v105 = vld [vmem:[#allocation5 + $0xb8] sm:$0xff]
    %v106 = vld [vmem:[#allocation5 + $0xc0] sm:$0xff]
    %v107 = vld [vmem:[#allocation5 + $0xc8] sm:$0xff]
    %v108 = vld [vmem:[#allocation5 + $0xd0] sm:$0xff]
    %v109 = vld [vmem:[#allocation5 + $0xd8] sm:$0xff]
    %v110 = vld [vmem:[#allocation5 + $0xe0] sm:$0xff]
    %v111 = vld [vmem:[#allocation5 + $0xe8] sm:$0xff]
    %v112 = vld [vmem:[#allocation5 + $0xf0] sm:$0xff]
    %v113 = vld [vmem:[#allocation5 + $0xf8] sm:$0xff]
    %v114 = vld [vmem:[#allocation7 + $0x1] sm:$0x1]
    %v115 = vperm.slane %v114, 0
    %116 = vmatpush.msra.mxu0 %v113
    %117 = vmatpush.msra.mxu0 %v112
    %118 = vmatpush.msra.mxu0 %v111
    %119 = vmatpush.msra.mxu0 %v110
    %120 = vmatpush.msra.mxu0 %v109
    %121 = vmatpush.msra.mxu0 %v108
    %122 = vmatpush.msra.mxu0 %v107
    %123 = vmatpush.msra.mxu0 %v106
    %124 = vmatpush.msra.mxu0 %v105
    %125 = vmatpush.msra.mxu0 %v104
    %126 = vmatpush.msra.mxu0 %v103
    %127 = vmatpush.msra.mxu0 %v102
    %128 = vmatpush.msra.mxu0 %v101
    %129 = vmatpush.msra.mxu0 %v100
    %130 = vmatpush.msra.mxu0 %v99
    %131 = vmatpush.msra.mxu0 %v98
    %132 = vmatmul.f32.gmra.mxu0 %v97
    %v133 = vpop.f32.mrf.mxu0
    %v134 = vadd.f32 %v115, %v133
    %135 = vdwg.mxu0
    %v136 = vmax.f32 %v134, 0.0
    %v137 = vld [vmem:[#allocation5 + $0x100] sm:$0xff]
    %v138 = vld [vmem:[#allocation5 + $0x108] sm:$0xff]
    %v139 = vld [vmem:[#allocation5 + $0x110] sm:$0xff]
    %v140 = vld [vmem:[#allocation5 + $0x118] sm:$0xff]
    %v141 = vld [vmem:[#allocation5 + $0x120] sm:$0xff]
    %v142 = vld [vmem:[#allocation5 + $0x128] sm:$0xff]
    %v143 = vld [vmem:[#allocation5 + $0x130] sm:$0xff]
    %v144 = vld [vmem:[#allocation5 + $0x138] sm:$0xff]
    %v145 = vld [vmem:[#allocation5 + $0x140] sm:$0xff]
    %v146 = vld [vmem:[#allocation5 + $0x148] sm:$0xff]
    %v147 = vld [vmem:[#allocation5 + $0x150] sm:$0xff]
    %v148 = vld [vmem:[#allocation5 + $0x158] sm:$0xff]
    %v149 = vld [vmem:[#allocation5 + $0x160] sm:$0xff]
    %v150 = vld [vmem:[#allocation5 + $0x168] sm:$0xff]
    %v151 = vld [vmem:[#allocation5 + $0x170] sm:$0xff]
    %v152 = vld [vmem:[#allocation5 + $0x178] sm:$0xff]
    %v153 = vld [vmem:[#allocation7 + $0x2] sm:$0x1]
    %v154 = vperm.slane %v153, 0
    %155 = vmatpush.msra.mxu0 %v152
    %156 = vmatpush.msra.mxu0 %v151
    %157 = vmatpush.msra.mxu0 %v150
    %158 = vmatpush.msra.mxu0 %v149
    %159 = vmatpush.msra.mxu0 %v148
    %160 = vmatpush.msra.mxu0 %v147
    %161 = vmatpush.msra.mxu0 %v146
    %162 = vmatpush.msra.mxu0 %v145
    %163 = vmatpush.msra.mxu0 %v144
    %164 = vmatpush.msra.mxu0 %v143
    %165 = vmatpush.msra.mxu0 %v142
    %166 = vmatpush.msra.mxu0 %v141
    %167 = vmatpush.msra.mxu0 %v140
    %168 = vmatpush.msra.mxu0 %v139
    %169 = vmatpush.msra.mxu0 %v138
    %170 = vmatpush.msra.mxu0 %v137
    %171 = vmatmul.f32.gmra.mxu0 %v136
    %v172 = vpop.f32.mrf.mxu0
    %v173 = vadd.f32 %v154, %v172
    %174 = vdwg.mxu0
    %175 = vst [vmem:[#allocation8] sm:$0xff] %v173
    // Predicated region
    $region26: #{tpu_custom_call.1} parent=1 // pred_check
      _
    $region27: #{tpu_custom_call.1} parent=1 // pred_check_branch
      %177 = sbr.rel (0) target = $region29
    $region28: #{tpu_custom_call.1} parent=1 // pred_region
      %179 = vsyncadd [#allocation4], 0
      %s181 = sshll.u32 [#allocation8], 4
      %s182 = int_to_ptr.vmem [resolvable:$true] %s181
      %s183 = sshll.u32 %s3, 4
      %s184 = int_to_ptr.hbm [resolvable:$true] %s183
      %186 = dma.vmem_to_hbm [thread:$0]  %s182, 128, %s184, [#allocation4]
    $region29: #{tpu_custom_call.1} parent=1 // pred_fallthru
      _
    // Predicated region
    $region30: #{tpu_custom_call.1} parent=1 // pred_check
      _
    $region31: #{tpu_custom_call.1} parent=1 // pred_check_branch
      %188 = sbr.rel (0) target = $region33
    $region32: #{tpu_custom_call.1} parent=1 // pred_region
      %190 = dma.done [#allocation4], 128
    $region33: #{tpu_custom_call.1} parent=1 // pred_fallthru
      _
    %191 = vsyncpa [#allocation3], 1
    %192 = vsyncpa [#allocation6], 1
    %193 = vsyncpa [#allocation4], 1

</llo_original>
